<compile_context>
chip_gen: v5e
topology: v5e:2x2
jax: 0.10.0
libtpu: 0.0.40
codegen_flags: <defaults>
</compile_context>

<pallas_src>
import math
import jax
import jax.numpy as jnp
from jax.experimental import pallas as pl
from jax.experimental.pallas import tpu as pltpu

# ---- problem sizes -----------------------------------------------------------
B = 2                     # batch
C, H, W = 4, 16, 16       # NCHW input
IN = C * H * W            # 1024 flattened features -> fc1 in_features
HID = 32                  # fc1 out_features
O = 20                    # SPN layer out_features (number of SPN neurons)
G = 3                     # Gaussian mixture components per scope
P = HID // 2              # 16 pairwise product nodes per neuron
OP = O * P                # 320 real product-node columns
OPP = 384                 # OP padded to a 128-lane multiple (3 * 128)
NCLS = 10                 # fc2 out_features


# ---- the Pallas kernel (whole forward pass, single invocation) ----------------
def spnnet_kernel(x_ref, w1_ref, b1_ref, oh_ref, mua_ref, mub_ref,
                  isa_ref, isb_ref, lnc_ref, w2t_ref, b2_ref, out_ref):
    # fc1 + ReLU: bf16 x bf16 on the MXU with f32 accumulation (native single-pass).
    h = jnp.dot(x_ref[...], w1_ref[...],
                preferred_element_type=jnp.float32) + b1_ref[...]
    h = jnp.maximum(h, 0.0)                                   # (B, HID) f32

    # Fused scope gather: one (B,32) x (32, 2*OPP) dot with a precomputed 0/1 matrix.
    # f32 one-hot => the selection is exact (each column has a single 1).
    hab = jnp.dot(h, oh_ref[...], preferred_element_type=jnp.float32)  # (B, 2*OPP)
    h_a = hab[:, :OPP]                                        # first scope partner
    h_b = hab[:, OPP:]                                        # second scope partner

    # Gaussian leaves + pairwise product nodes (pure elementwise, f32).
    mu_a = mua_ref[...]; mu_b = mub_ref[...]                  # (G, OPP)
    is_a = isa_ref[...]; is_b = isb_ref[...]                  # (G, OPP)  1/sigma
    lnc = lnc_ref[...]                                        # (G, OPP)  norm consts + log mix w
    pps = []
    for g in range(G):                                        # G = 3, static unroll
        za = (h_a - mu_a[g:g + 1, :]) * is_a[g:g + 1, :]
        zb = (h_b - mu_b[g:g + 1, :]) * is_b[g:g + 1, :]
        pps.append(-0.5 * (za * za + zb * zb) + lnc[g:g + 1, :])   # (B, OPP)

    # sum nodes: logsumexp over the G mixture components
    m = pps[0]
    for g in range(1, G):
        m = jnp.maximum(m, pps[g])
    acc = jnp.exp(pps[0] - m)
    for g in range(1, G):
        acc = acc + jnp.exp(pps[g] - m)
    s = jnp.log(acc) + m                                      # (B, OPP)

    # root product (sum over P) folded into fc2 (zero rows for the OP->OPP padding):
    logits = jnp.dot(s, w2t_ref[...],
                     preferred_element_type=jnp.float32) + b2_ref[...]

    # log_softmax(dim=1)
    lmax = jnp.max(logits, axis=1, keepdims=True)
    lse = jnp.log(jnp.sum(jnp.exp(logits - lmax), axis=1, keepdims=True)) + lmax
    out_ref[...] = logits - lse


# ---- parameter construction (deterministic, in-script) -----------------------
def init_params(key):
    ks = jax.random.split(key, 8)
    # fc1 / fc2: kaiming_normal_ weights, PyTorch-default uniform bias.
    w1 = jax.random.normal(ks[0], (HID, IN), jnp.float32) * jnp.sqrt(2.0 / IN)
    b1 = jax.random.uniform(ks[1], (1, HID), jnp.float32,
                            -1.0 / math.sqrt(IN), 1.0 / math.sqrt(IN))
    w2 = jax.random.normal(ks[2], (NCLS, O), jnp.float32) * jnp.sqrt(2.0 / O)
    b2 = jax.random.uniform(ks[3], (1, NCLS), jnp.float32,
                            -1.0 / math.sqrt(O), 1.0 / math.sqrt(O))

    # SPN neuron leaf Gaussians and sum-node mixture weights.
    mu = jax.random.normal(ks[4], (O, G, HID), jnp.float32)
    sig = jax.random.uniform(ks[5], (O, G, HID), jnp.float32, 0.5, 1.5)
    wsum = jax.random.uniform(ks[6], (O, G, P), jnp.float32, 0.01, 1.0)
    logw = jnp.log(wsum / jnp.sum(wsum, axis=1, keepdims=True))

    # Per-neuron random scope permutations -> pairwise product scopes.
    perm = jnp.stack([jax.random.permutation(k, HID)
                      for k in jax.random.split(ks[7], O)])          # (O, HID)
    pa = perm[:, 0::2]                                               # (O, P) first partner
    pb = perm[:, 1::2]                                               # (O, P) second partner

    # Fold the permutation into the Gaussian params: column c = o*P + p.
    def fold(arr, idx):                  # arr (O, G, HID), idx (O, P) -> (G, OP)
        idx3 = jnp.broadcast_to(idx[:, None, :], (O, G, P))
        g = jnp.take_along_axis(arr, idx3, axis=2)                   # (O, G, P)
        return jnp.transpose(g, (1, 0, 2)).reshape(G, OP)

    mu_a, mu_b = fold(mu, pa), fold(mu, pb)
    sig_a, sig_b = fold(sig, pa), fold(sig, pb)
    logw2 = jnp.transpose(logw, (1, 0, 2)).reshape(G, OP)
    lnc = (-jnp.log(sig_a) - jnp.log(sig_b)
           - math.log(2.0 * math.pi) + logw2)                        # (G, OP)

    # Pad OP -> OPP with harmless values (mu=0, 1/sigma=1, lnc=0 -> finite, and the
    # matching w2t rows are zero so padded columns never touch the logits).
    def padc(a, val):
        return jnp.pad(a, ((0, 0), (0, OPP - OP)), constant_values=val)
    mu_a_p, mu_b_p = padc(mu_a, 0.0), padc(mu_b, 0.0)
    is_a_p, is_b_p = padc(1.0 / sig_a, 1.0), padc(1.0 / sig_b, 1.0)
    lnc_p = padc(lnc, 0.0)

    # Fused one-hot gather matrix (HID, 2*OPP), f32 (exact selection, zero pad cols).
    col = jnp.arange(HID, dtype=jnp.int32)[:, None]                  # (HID, 1)
    ga = (col == pa.reshape(1, OP)).astype(jnp.float32)              # (HID, OP)
    gb = (col == pb.reshape(1, OP)).astype(jnp.float32)
    zpad = jnp.zeros((HID, OPP - OP), jnp.float32)
    onehot = jnp.concatenate([ga, zpad, gb, zpad], axis=1)           # (HID, 2*OPP)

    # sum_mat + padding folded into fc2, pre-transposed to canonical (K, N).
    w2t = jnp.pad(jnp.repeat(w2, P, axis=1), ((0, 0), (0, OPP - OP)))  # (NCLS, OPP)
    w2t_kn = jnp.transpose(w2t)                                       # (OPP, NCLS)

    # bf16 storage for the dominant weight, pre-transposed to (K, N) = (IN, HID).
    w1_bf = jnp.transpose(w1).astype(jnp.bfloat16)

    kernel_params = (w1_bf, b1, onehot, mu_a_p, mu_b_p,
                     is_a_p, is_b_p, lnc_p, w2t_kn, b2)
    # Reference uses the same bf16-rounded fc1 weights (inference-time weight
    # quantization); x is also rounded to bf16 in both paths.
    w1q = w1.astype(jnp.bfloat16).astype(jnp.float32)
    ref_params = (w1q, b1, w2, b2, mu, sig, logw, perm)
    return kernel_params, ref_params


# ---- wrapper around pallas_call ----------------------------------------------
def spnnet_forward(x_nchw, kernel_params):
    # torch .view(B, -1); activations fed to the MXU in bf16.
    x = x_nchw.reshape(x_nchw.shape[0], -1).astype(jnp.bfloat16)
    operands = (x,) + tuple(kernel_params)
    vmem = pl.BlockSpec(memory_space=pltpu.MemorySpace.VMEM)
    # Single grid step => no grid at all (nothing to pipeline, no double-buffering).
    return pl.pallas_call(
        spnnet_kernel,
        out_shape=jax.ShapeDtypeStruct((x.shape[0], NCLS), jnp.float32),
        in_specs=[vmem] * len(operands),
        out_specs=vmem,
    )(*operands)


# ---- pure-JAX reference for validation ---------------------------------------
def reference_forward(x_nchw, ref_params):
    w1q, b1, w2, b2, mu, sig, logw, perm = ref_params
    xq = (x_nchw.reshape(x_nchw.shape[0], -1)
          .astype(jnp.bfloat16).astype(jnp.float32))                 # same bf16 rounding of x
    h = jax.nn.relu(xq @ w1q.T + b1[0])                              # (B, HID)
    hp = h[:, None, None, :]                                         # (B,1,1,HID)
    lp = (-0.5 * ((hp - mu) / sig) ** 2
          - jnp.log(sig) - 0.5 * math.log(2.0 * math.pi))            # (B,O,G,HID)
    idx = jnp.broadcast_to(perm[None, :, None, :], lp.shape)
    lp_perm = jnp.take_along_axis(lp, idx, axis=3)
    pairs = lp_perm.reshape(B, O, G, P, 2).sum(axis=-1)              # product nodes
    s = jax.nn.logsumexp(pairs + logw[None, :, :, :], axis=2)        # sum nodes (B,O,P)
    spn = s.sum(axis=2)                                              # root products (B,O)
    logits = spn @ w2.T + b2[0]
    return jax.nn.log_softmax(logits, axis=1)


if __name__ == "__main__":
    key = jax.random.PRNGKey(0)
    k_param, k_x = jax.random.split(key)
    kernel_params, ref_params = init_params(k_param)
    x = jax.random.normal(k_x, (B, C, H, W), jnp.float32)

    out = jax.block_until_ready(spnnet_forward(x, kernel_params))
    ref = jax.block_until_ready(reference_forward(x, ref_params))

    assert out.shape == (B, NCLS)
    assert bool(jnp.all(jnp.isfinite(out)))
    assert bool(jnp.allclose(out, ref, rtol=1e-3, atol=1e-2)), (out, ref)
    print("KERNEL_OK")
</pallas_src>

<mosaic_0001>
module attributes {stable_mosaic.version = 11 : i64} {
  func.func @spnnet_kernel(%arg0: memref<2x1024xbf16, #tpu.memory_space<vmem>>, %arg1: memref<1024x32xbf16, #tpu.memory_space<vmem>>, %arg2: memref<1x32xf32, #tpu.memory_space<vmem>>, %arg3: memref<32x768xf32, #tpu.memory_space<vmem>>, %arg4: memref<3x384xf32, #tpu.memory_space<vmem>>, %arg5: memref<3x384xf32, #tpu.memory_space<vmem>>, %arg6: memref<3x384xf32, #tpu.memory_space<vmem>>, %arg7: memref<3x384xf32, #tpu.memory_space<vmem>>, %arg8: memref<3x384xf32, #tpu.memory_space<vmem>>, %arg9: memref<384x10xf32, #tpu.memory_space<vmem>>, %arg10: memref<1x10xf32, #tpu.memory_space<vmem>>, %arg11: memref<2x10xf32, #tpu.memory_space<vmem>>) attributes {dimension_semantics = [], scalar_prefetch = 0 : i64, scratch_operands = 0 : i64, tpu.core_type = #tpu.core_type<tc>} {
    %c0 = arith.constant 0 : index
    %c0_0 = arith.constant 0 : index
    %0 = vector.load %arg0[%c0, %c0_0] : memref<2x1024xbf16, #tpu.memory_space<vmem>>, vector<2x1024xbf16>
    %c0_1 = arith.constant 0 : index
    %c0_2 = arith.constant 0 : index
    %1 = vector.load %arg1[%c0_1, %c0_2] : memref<1024x32xbf16, #tpu.memory_space<vmem>>, vector<1024x32xbf16>
    %cst = arith.constant dense<0.000000e+00> : vector<2x32xf32>
    %2 = tpu.matmul %0, %1, %cst {dimension_numbers = #tpu.dot_dimension_numbers<[1], [0], [0], [1], [0, 0, 1, 1], [], []>} : vector<2x1024xbf16>, vector<1024x32xbf16>, vector<2x32xf32> -> vector<2x32xf32>
    %c0_3 = arith.constant 0 : index
    %c0_4 = arith.constant 0 : index
    %3 = vector.load %arg2[%c0_3, %c0_4] : memref<1x32xf32, #tpu.memory_space<vmem>>, vector<1x32xf32>
    %4 = vector.broadcast %3 : vector<1x32xf32> to vector<2x32xf32>
    %5 = arith.addf %2, %4 : vector<2x32xf32>
    %cst_5 = arith.constant 0.000000e+00 : f32
    %6 = vector.broadcast %cst_5 : f32 to vector<2x32xf32>
    %7 = arith.maximumf %5, %6 : vector<2x32xf32>
    %c0_6 = arith.constant 0 : index
    %c0_7 = arith.constant 0 : index
    %8 = vector.load %arg3[%c0_6, %c0_7] : memref<32x768xf32, #tpu.memory_space<vmem>>, vector<32x768xf32>
    %cst_8 = arith.constant dense<0.000000e+00> : vector<2x768xf32>
    %9 = tpu.matmul %7, %8, %cst_8 {dimension_numbers = #tpu.dot_dimension_numbers<[1], [0], [0], [1], [0, 0, 1, 1], [], []>} : vector<2x32xf32>, vector<32x768xf32>, vector<2x768xf32> -> vector<2x768xf32>
    %10 = vector.extract_strided_slice %9 {offsets = [0, 0], sizes = [2, 384], strides = [1, 1]} : vector<2x768xf32> to vector<2x384xf32>
    %11 = vector.extract_strided_slice %9 {offsets = [0, 384], sizes = [2, 384], strides = [1, 1]} : vector<2x768xf32> to vector<2x384xf32>
    %c0_9 = arith.constant 0 : index
    %c0_10 = arith.constant 0 : index
    %12 = vector.load %arg4[%c0_9, %c0_10] : memref<3x384xf32, #tpu.memory_space<vmem>>, vector<3x384xf32>
    %c0_11 = arith.constant 0 : index
    %c0_12 = arith.constant 0 : index
    %13 = vector.load %arg5[%c0_11, %c0_12] : memref<3x384xf32, #tpu.memory_space<vmem>>, vector<3x384xf32>
    %c0_13 = arith.constant 0 : index
    %c0_14 = arith.constant 0 : index
    %14 = vector.load %arg6[%c0_13, %c0_14] : memref<3x384xf32, #tpu.memory_space<vmem>>, vector<3x384xf32>
    %c0_15 = arith.constant 0 : index
    %c0_16 = arith.constant 0 : index
    %15 = vector.load %arg7[%c0_15, %c0_16] : memref<3x384xf32, #tpu.memory_space<vmem>>, vector<3x384xf32>
    %c0_17 = arith.constant 0 : index
    %c0_18 = arith.constant 0 : index
    %16 = vector.load %arg8[%c0_17, %c0_18] : memref<3x384xf32, #tpu.memory_space<vmem>>, vector<3x384xf32>
    %17 = vector.extract_strided_slice %12 {offsets = [0, 0], sizes = [1, 384], strides = [1, 1]} : vector<3x384xf32> to vector<1x384xf32>
    %18 = vector.broadcast %17 : vector<1x384xf32> to vector<2x384xf32>
    %19 = arith.subf %10, %18 : vector<2x384xf32>
    %20 = vector.extract_strided_slice %14 {offsets = [0, 0], sizes = [1, 384], strides = [1, 1]} : vector<3x384xf32> to vector<1x384xf32>
    %21 = vector.broadcast %20 : vector<1x384xf32> to vector<2x384xf32>
    %22 = arith.mulf %19, %21 : vector<2x384xf32>
    %23 = vector.extract_strided_slice %13 {offsets = [0, 0], sizes = [1, 384], strides = [1, 1]} : vector<3x384xf32> to vector<1x384xf32>
    %24 = vector.broadcast %23 : vector<1x384xf32> to vector<2x384xf32>
    %25 = arith.subf %11, %24 : vector<2x384xf32>
    %26 = vector.extract_strided_slice %15 {offsets = [0, 0], sizes = [1, 384], strides = [1, 1]} : vector<3x384xf32> to vector<1x384xf32>
    %27 = vector.broadcast %26 : vector<1x384xf32> to vector<2x384xf32>
    %28 = arith.mulf %25, %27 : vector<2x384xf32>
    %29 = arith.mulf %22, %22 : vector<2x384xf32>
    %30 = arith.mulf %28, %28 : vector<2x384xf32>
    %31 = arith.addf %29, %30 : vector<2x384xf32>
    %cst_19 = arith.constant -5.000000e-01 : f32
    %32 = vector.broadcast %cst_19 : f32 to vector<2x384xf32>
    %33 = arith.mulf %32, %31 : vector<2x384xf32>
    %34 = vector.extract_strided_slice %16 {offsets = [0, 0], sizes = [1, 384], strides = [1, 1]} : vector<3x384xf32> to vector<1x384xf32>
    %35 = vector.broadcast %34 : vector<1x384xf32> to vector<2x384xf32>
    %36 = arith.addf %33, %35 : vector<2x384xf32>
    %37 = vector.extract_strided_slice %12 {offsets = [1, 0], sizes = [1, 384], strides = [1, 1]} : vector<3x384xf32> to vector<1x384xf32>
    %38 = vector.broadcast %37 : vector<1x384xf32> to vector<2x384xf32>
    %39 = arith.subf %10, %38 : vector<2x384xf32>
    %40 = vector.extract_strided_slice %14 {offsets = [1, 0], sizes = [1, 384], strides = [1, 1]} : vector<3x384xf32> to vector<1x384xf32>
    %41 = vector.broadcast %40 : vector<1x384xf32> to vector<2x384xf32>
    %42 = arith.mulf %39, %41 : vector<2x384xf32>
    %43 = vector.extract_strided_slice %13 {offsets = [1, 0], sizes = [1, 384], strides = [1, 1]} : vector<3x384xf32> to vector<1x384xf32>
    %44 = vector.broadcast %43 : vector<1x384xf32> to vector<2x384xf32>
    %45 = arith.subf %11, %44 : vector<2x384xf32>
    %46 = vector.extract_strided_slice %15 {offsets = [1, 0], sizes = [1, 384], strides = [1, 1]} : vector<3x384xf32> to vector<1x384xf32>
    %47 = vector.broadcast %46 : vector<1x384xf32> to vector<2x384xf32>
    %48 = arith.mulf %45, %47 : vector<2x384xf32>
    %49 = arith.mulf %42, %42 : vector<2x384xf32>
    %50 = arith.mulf %48, %48 : vector<2x384xf32>
    %51 = arith.addf %49, %50 : vector<2x384xf32>
    %cst_20 = arith.constant -5.000000e-01 : f32
    %52 = vector.broadcast %cst_20 : f32 to vector<2x384xf32>
    %53 = arith.mulf %52, %51 : vector<2x384xf32>
    %54 = vector.extract_strided_slice %16 {offsets = [1, 0], sizes = [1, 384], strides = [1, 1]} : vector<3x384xf32> to vector<1x384xf32>
    %55 = vector.broadcast %54 : vector<1x384xf32> to vector<2x384xf32>
    %56 = arith.addf %53, %55 : vector<2x384xf32>
    %57 = vector.extract_strided_slice %12 {offsets = [2, 0], sizes = [1, 384], strides = [1, 1]} : vector<3x384xf32> to vector<1x384xf32>
    %58 = vector.broadcast %57 : vector<1x384xf32> to vector<2x384xf32>
    %59 = arith.subf %10, %58 : vector<2x384xf32>
    %60 = vector.extract_strided_slice %14 {offsets = [2, 0], sizes = [1, 384], strides = [1, 1]} : vector<3x384xf32> to vector<1x384xf32>
    %61 = vector.broadcast %60 : vector<1x384xf32> to vector<2x384xf32>
    %62 = arith.mulf %59, %61 : vector<2x384xf32>
    %63 = vector.extract_strided_slice %13 {offsets = [2, 0], sizes = [1, 384], strides = [1, 1]} : vector<3x384xf32> to vector<1x384xf32>
    %64 = vector.broadcast %63 : vector<1x384xf32> to vector<2x384xf32>
    %65 = arith.subf %11, %64 : vector<2x384xf32>
    %66 = vector.extract_strided_slice %15 {offsets = [2, 0], sizes = [1, 384], strides = [1, 1]} : vector<3x384xf32> to vector<1x384xf32>
    %67 = vector.broadcast %66 : vector<1x384xf32> to vector<2x384xf32>
    %68 = arith.mulf %65, %67 : vector<2x384xf32>
    %69 = arith.mulf %62, %62 : vector<2x384xf32>
    %70 = arith.mulf %68, %68 : vector<2x384xf32>
    %71 = arith.addf %69, %70 : vector<2x384xf32>
    %cst_21 = arith.constant -5.000000e-01 : f32
    %72 = vector.broadcast %cst_21 : f32 to vector<2x384xf32>
    %73 = arith.mulf %72, %71 : vector<2x384xf32>
    %74 = vector.extract_strided_slice %16 {offsets = [2, 0], sizes = [1, 384], strides = [1, 1]} : vector<3x384xf32> to vector<1x384xf32>
    %75 = vector.broadcast %74 : vector<1x384xf32> to vector<2x384xf32>
    %76 = arith.addf %73, %75 : vector<2x384xf32>
    %77 = arith.maximumf %36, %56 : vector<2x384xf32>
    %78 = arith.maximumf %77, %76 : vector<2x384xf32>
    %79 = arith.subf %36, %78 : vector<2x384xf32>
    %80 = math.exp %79 : vector<2x384xf32>
    %81 = arith.subf %56, %78 : vector<2x384xf32>
    %82 = math.exp %81 : vector<2x384xf32>
    %83 = arith.addf %80, %82 : vector<2x384xf32>
    %84 = arith.subf %76, %78 : vector<2x384xf32>
    %85 = math.exp %84 : vector<2x384xf32>
    %86 = arith.addf %83, %85 : vector<2x384xf32>
    %87 = math.log %86 : vector<2x384xf32>
    %88 = arith.addf %87, %78 : vector<2x384xf32>
    %c0_22 = arith.constant 0 : index
    %c0_23 = arith.constant 0 : index
    %89 = vector.load %arg9[%c0_22, %c0_23] : memref<384x10xf32, #tpu.memory_space<vmem>>, vector<384x10xf32>
    %cst_24 = arith.constant dense<0.000000e+00> : vector<2x10xf32>
    %90 = tpu.matmul %88, %89, %cst_24 {dimension_numbers = #tpu.dot_dimension_numbers<[1], [0], [0], [1], [0, 0, 1, 1], [], []>} : vector<2x384xf32>, vector<384x10xf32>, vector<2x10xf32> -> vector<2x10xf32>
    %c0_25 = arith.constant 0 : index
    %c0_26 = arith.constant 0 : index
    %91 = vector.load %arg10[%c0_25, %c0_26] : memref<1x10xf32, #tpu.memory_space<vmem>>, vector<1x10xf32>
    %92 = vector.broadcast %91 : vector<1x10xf32> to vector<2x10xf32>
    %93 = arith.addf %90, %92 : vector<2x10xf32>
    %cst_27 = arith.constant dense<0xFF800000> : vector<2xf32>
    %94 = vector.multi_reduction <maximumf>, %93, %cst_27 [1] : vector<2x10xf32> to vector<2xf32>
    %95 = vector.shape_cast %94 : vector<2xf32> to vector<2x1xf32>
    %96 = vector.broadcast %95 : vector<2x1xf32> to vector<2x10xf32>
    %97 = arith.subf %93, %96 : vector<2x10xf32>
    %98 = math.exp %97 : vector<2x10xf32>
    %cst_28 = arith.constant dense<0.000000e+00> : vector<2xf32>
    %99 = vector.multi_reduction <add>, %98, %cst_28 [1] : vector<2x10xf32> to vector<2xf32>
    %100 = vector.shape_cast %99 : vector<2xf32> to vector<2x1xf32>
    %101 = math.log %100 : vector<2x1xf32>
    %102 = arith.addf %101, %95 : vector<2x1xf32>
    %103 = vector.broadcast %102 : vector<2x1xf32> to vector<2x10xf32>
    %104 = arith.subf %93, %103 : vector<2x10xf32>
    %c0_29 = arith.constant 0 : index
    %c0_30 = arith.constant 0 : index
    %105 = vector.load %arg11[%c0_29, %c0_30] : memref<2x10xf32, #tpu.memory_space<vmem>>, vector<2x10xf32>
    tpu.vector_store %arg11[%c0_29, %c0_30], %104 {strides = array<i32>} : memref<2x10xf32, #tpu.memory_space<vmem>>, vector<2x10xf32>,
    return
  }
}

</mosaic_0001>

<llo_original>
// kernel: tpu_custom_call.1
$region0: #{tpu_custom_call.1}
  #allocation0 [shape = 'u32[]', space=smem, size = 0x4, offset = 0x4, fixed_abs, tag = 'smem constant byte address 0x4 - core index']
  #allocation1 [shape = 'u32[72,128]{1,0:T(1,128)}', space=vmem, size = 0x9000, scoped, tag = 'internal scratch']
  %s0 = inlined_call_operand.vmem [shape: bf16[2,1024], index: 0, kind: input, shape index: {}]
  %s1 = inlined_call_operand.vmem [shape: bf16[1024,32], index: 1, kind: input, shape index: {}]
  %s2 = inlined_call_operand.vmem [shape: f32[1,32], index: 2, kind: input, shape index: {}]
  %s3 = inlined_call_operand.vmem [shape: f32[32,768], index: 3, kind: input, shape index: {}]
  %s4 = inlined_call_operand.vmem [shape: f32[3,384], index: 4, kind: input, shape index: {}]
  %s5 = inlined_call_operand.vmem [shape: f32[3,384], index: 5, kind: input, shape index: {}]
  %s6 = inlined_call_operand.vmem [shape: f32[3,384], index: 6, kind: input, shape index: {}]
  %s7 = inlined_call_operand.vmem [shape: f32[3,384], index: 7, kind: input, shape index: {}]
  %s8 = inlined_call_operand.vmem [shape: f32[3,384], index: 8, kind: input, shape index: {}]
  %s9 = inlined_call_operand.vmem [shape: f32[384,10], index: 9, kind: input, shape index: {}]
  %s10 = inlined_call_operand.vmem [shape: f32[1,10], index: 10, kind: input, shape index: {}]
  %s11 = inlined_call_operand.hbm [shape: f32[2,10], index: 11, kind: output, shape index: {}]
  %s12 = sld [smem:[#allocation0]]
  $region54: #{tpu_custom_call.1} parent=0
    _
  %s14 = ssub.s32 1, %s12
  %s15 = scalar_select 0, %s14, %s12
  $region1: #{tpu_custom_call.1} parent=0
    #allocation2 [shape = 'u8[1024]{0}', space=vmem, size = 0x400, scoped, tag = 'output window, operand 0, single buffered']
    #allocation3 [shape = 's32[1]{0}', space=sflag, size = 0x4, scoped, tag = 'scoped memory for tpu_custom_call.1']
    %16 = vsyncpa [#allocation3], 0
    // Predicated region
    $region2: #{tpu_custom_call.1} parent=1 // pred_check
      _
    $region3: #{tpu_custom_call.1} parent=1 // pred_check_branch
      %18 = sbr.rel (0) target = $region5
    $region4: #{tpu_custom_call.1} parent=1 // pred_region
      _
    $region5: #{tpu_custom_call.1} parent=1 // pred_fallthru
      _
    // Predicated region
    $region6: #{tpu_custom_call.1} parent=1 // pred_check
      _
    $region7: #{tpu_custom_call.1} parent=1 // pred_check_branch
      %20 = sbr.rel (0) target = $region9
    $region8: #{tpu_custom_call.1} parent=1 // pred_region
      _
    $region9: #{tpu_custom_call.1} parent=1 // pred_fallthru
      _
    // Predicated region
    $region10: #{tpu_custom_call.1} parent=1 // pred_check
      _
    $region11: #{tpu_custom_call.1} parent=1 // pred_check_branch
      %22 = sbr.rel (0) target = $region13
    $region12: #{tpu_custom_call.1} parent=1 // pred_region
      _
    $region13: #{tpu_custom_call.1} parent=1 // pred_fallthru
      _
    // Predicated region
    $region14: #{tpu_custom_call.1} parent=1 // pred_check
      _
    $region15: #{tpu_custom_call.1} parent=1 // pred_check_branch
      %24 = sbr.rel (0) target = $region17
    $region16: #{tpu_custom_call.1} parent=1 // pred_region
      _
    $region17: #{tpu_custom_call.1} parent=1 // pred_fallthru
      _
    // Predicated region
    $region18: #{tpu_custom_call.1} parent=1 // pred_check
      _
    $region19: #{tpu_custom_call.1} parent=1 // pred_check_branch
      %26 = sbr.rel (0) target = $region21
    $region20: #{tpu_custom_call.1} parent=1 // pred_region
      _
    $region21: #{tpu_custom_call.1} parent=1 // pred_fallthru
      _
    // Predicated region
    $region22: #{tpu_custom_call.1} parent=1 // pred_check
      _
    $region23: #{tpu_custom_call.1} parent=1 // pred_check_branch
      %28 = sbr.rel (0) target = $region25
    $region24: #{tpu_custom_call.1} parent=1 // pred_region
      _
    $region25: #{tpu_custom_call.1} parent=1 // pred_fallthru
      _
    // Predicated region
    $region26: #{tpu_custom_call.1} parent=1 // pred_check
      _
    $region27: #{tpu_custom_call.1} parent=1 // pred_check_branch
      %30 = sbr.rel (0) target = $region29
    $region28: #{tpu_custom_call.1} parent=1 // pred_region
      _
    $region29: #{tpu_custom_call.1} parent=1 // pred_fallthru
      _
    // Predicated region
    $region30: #{tpu_custom_call.1} parent=1 // pred_check
      _
    $region31: #{tpu_custom_call.1} parent=1 // pred_check_branch
      %32 = sbr.rel (0) target = $region33
    $region32: #{tpu_custom_call.1} parent=1 // pred_region
      _
    $region33: #{tpu_custom_call.1} parent=1 // pred_fallthru
      _
    // Predicated region
    $region34: #{tpu_custom_call.1} parent=1 // pred_check
      _
    $region35: #{tpu_custom_call.1} parent=1 // pred_check_branch
      %34 = sbr.rel (0) target = $region37
    $region36: #{tpu_custom_call.1} parent=1 // pred_region
      _
    $region37: #{tpu_custom_call.1} parent=1 // pred_fallthru
      _
    // Predicated region
    $region38: #{tpu_custom_call.1} parent=1 // pred_check
      _
    $region39: #{tpu_custom_call.1} parent=1 // pred_check_branch
      %36 = sbr.rel (0) target = $region41
    $region40: #{tpu_custom_call.1} parent=1 // pred_region
      _
    $region41: #{tpu_custom_call.1} parent=1 // pred_fallthru
      _
    // Predicated region
    $region42: #{tpu_custom_call.1} parent=1 // pred_check
      _
    $region43: #{tpu_custom_call.1} parent=1 // pred_check_branch
      %38 = sbr.rel (0) target = $region45
    $region44: #{tpu_custom_call.1} parent=1 // pred_region
      _
    $region45: #{tpu_custom_call.1} parent=1 // pred_fallthru
      _
    %v39 = vld [vmem:[%s0] sm:$0xff]
    %v40 = vld [vmem:[%s1] sm:$0xf]
    %v41 = vld [vmem:[%s1 + $0x4] sm:$0xf]
    %v42 = vld [vmem:[%s1 + $0x8] sm:$0xf]
    %v43 = vld [vmem:[%s1 + $0xc] sm:$0xf]
    %v44 = vld [vmem:[%s1 + $0x10] sm:$0xf]
    %v45 = vld [vmem:[%s1 + $0x14] sm:$0xf]
    %v46 = vld [vmem:[%s1 + $0x18] sm:$0xf]
    %v47 = vld [vmem:[%s1 + $0x1c] sm:$0xf]
    %v48 = vld [vmem:[%s1 + $0x20] sm:$0xf]
    %v49 = vld [vmem:[%s1 + $0x24] sm:$0xf]
    %v50 = vld [vmem:[%s1 + $0x28] sm:$0xf]
    %v51 = vld [vmem:[%s1 + $0x2c] sm:$0xf]
    %v52 = vld [vmem:[%s1 + $0x30] sm:$0xf]
    %v53 = vld [vmem:[%s1 + $0x34] sm:$0xf]
    %v54 = vld [vmem:[%s1 + $0x38] sm:$0xf]
    %v55 = vld [vmem:[%s1 + $0x3c] sm:$0xf]
    %v56 = vld [vmem:[%s1 + $0x40] sm:$0xf]
    %v57 = vld [vmem:[%s1 + $0x44] sm:$0xf]
    %v58 = vld [vmem:[%s1 + $0x48] sm:$0xf]
    %v59 = vld [vmem:[%s1 + $0x4c] sm:$0xf]
    %v60 = vld [vmem:[%s1 + $0x50] sm:$0xf]
    %v61 = vld [vmem:[%s1 + $0x54] sm:$0xf]
    %v62 = vld [vmem:[%s1 + $0x58] sm:$0xf]
    %v63 = vld [vmem:[%s1 + $0x5c] sm:$0xf]
    %v64 = vld [vmem:[%s1 + $0x60] sm:$0xf]
    %v65 = vld [vmem:[%s1 + $0x64] sm:$0xf]
    %v66 = vld [vmem:[%s1 + $0x68] sm:$0xf]
    %v67 = vld [vmem:[%s1 + $0x6c] sm:$0xf]
    %v68 = vld [vmem:[%s1 + $0x70] sm:$0xf]
    %v69 = vld [vmem:[%s1 + $0x74] sm:$0xf]
    %v70 = vld [vmem:[%s1 + $0x78] sm:$0xf]
    %v71 = vld [vmem:[%s1 + $0x7c] sm:$0xf]
    %v72 = vld [vmem:[%s1 + $0x80] sm:$0xf]
    %v73 = vld [vmem:[%s1 + $0x84] sm:$0xf]
    %v74 = vld [vmem:[%s1 + $0x88] sm:$0xf]
    %v75 = vld [vmem:[%s1 + $0x8c] sm:$0xf]
    %v76 = vld [vmem:[%s1 + $0x90] sm:$0xf]
    %v77 = vld [vmem:[%s1 + $0x94] sm:$0xf]
    %v78 = vld [vmem:[%s1 + $0x98] sm:$0xf]
    %v79 = vld [vmem:[%s1 + $0x9c] sm:$0xf]
    %v80 = vld [vmem:[%s1 + $0xa0] sm:$0xf]
    %v81 = vld [vmem:[%s1 + $0xa4] sm:$0xf]
    %v82 = vld [vmem:[%s1 + $0xa8] sm:$0xf]
    %v83 = vld [vmem:[%s1 + $0xac] sm:$0xf]
    %v84 = vld [vmem:[%s1 + $0xb0] sm:$0xf]
    %v85 = vld [vmem:[%s1 + $0xb4] sm:$0xf]
    %v86 = vld [vmem:[%s1 + $0xb8] sm:$0xf]
    %v87 = vld [vmem:[%s1 + $0xbc] sm:$0xf]
    %v88 = vld [vmem:[%s1 + $0xc0] sm:$0xf]
    %v89 = vld [vmem:[%s1 + $0xc4] sm:$0xf]
    %v90 = vld [vmem:[%s1 + $0xc8] sm:$0xf]
    %v91 = vld [vmem:[%s1 + $0xcc] sm:$0xf]
    %v92 = vld [vmem:[%s1 + $0xd0] sm:$0xf]
    %v93 = vld [vmem:[%s1 + $0xd4] sm:$0xf]
    %v94 = vld [vmem:[%s1 + $0xd8] sm:$0xf]
    %v95 = vld [vmem:[%s1 + $0xdc] sm:$0xf]
    %v96 = vld [vmem:[%s1 + $0xe0] sm:$0xf]
    %v97 = vld [vmem:[%s1 + $0xe4] sm:$0xf]
    %v98 = vld [vmem:[%s1 + $0xe8] sm:$0xf]
    %v99 = vld [vmem:[%s1 + $0xec] sm:$0xf]
    %v100 = vld [vmem:[%s1 + $0xf0] sm:$0xf]
    %v101 = vld [vmem:[%s1 + $0xf4] sm:$0xf]
    %v102 = vld [vmem:[%s1 + $0xf8] sm:$0xf]
    %v103 = vld [vmem:[%s1 + $0xfc] sm:$0xf]
    %v104 = vld [vmem:[%s1 + $0x100] sm:$0xf]
    %v105 = vld [vmem:[%s1 + $0x104] sm:$0xf]
    %v106 = vld [vmem:[%s1 + $0x108] sm:$0xf]
    %v107 = vld [vmem:[%s1 + $0x10c] sm:$0xf]
    %v108 = vld [vmem:[%s1 + $0x110] sm:$0xf]
    %v109 = vld [vmem:[%s1 + $0x114] sm:$0xf]
    %v110 = vld [vmem:[%s1 + $0x118] sm:$0xf]
    %v111 = vld [vmem:[%s1 + $0x11c] sm:$0xf]
    %v112 = vld [vmem:[%s1 + $0x120] sm:$0xf]
    %v113 = vld [vmem:[%s1 + $0x124] sm:$0xf]
    %v114 = vld [vmem:[%s1 + $0x128] sm:$0xf]
    %v115 = vld [vmem:[%s1 + $0x12c] sm:$0xf]
    %v116 = vld [vmem:[%s1 + $0x130] sm:$0xf]
    %v117 = vld [vmem:[%s1 + $0x134] sm:$0xf]
    %v118 = vld [vmem:[%s1 + $0x138] sm:$0xf]
    %v119 = vld [vmem:[%s1 + $0x13c] sm:$0xf]
    %v120 = vld [vmem:[%s1 + $0x140] sm:$0xf]
    %v121 = vld [vmem:[%s1 + $0x144] sm:$0xf]
    %v122 = vld [vmem:[%s1 + $0x148] sm:$0xf]
    %v123 = vld [vmem:[%s1 + $0x14c] sm:$0xf]
    %v124 = vld [vmem:[%s1 + $0x150] sm:$0xf]
    %v125 = vld [vmem:[%s1 + $0x154] sm:$0xf]
    %v126 = vld [vmem:[%s1 + $0x158] sm:$0xf]
    %v127 = vld [vmem:[%s1 + $0x15c] sm:$0xf]
    %v128 = vld [vmem:[%s1 + $0x160] sm:$0xf]
    %v129 = vld [vmem:[%s1 + $0x164] sm:$0xf]
    %v130 = vld [vmem:[%s1 + $0x168] sm:$0xf]
    %v131 = vld [vmem:[%s1 + $0x16c] sm:$0xf]
    %v132 = vld [vmem:[%s1 + $0x170] sm:$0xf]
    %v133 = vld [vmem:[%s1 + $0x174] sm:$0xf]
    %v134 = vld [vmem:[%s1 + $0x178] sm:$0xf]
    %v135 = vld [vmem:[%s1 + $0x17c] sm:$0xf]
    %v136 = vld [vmem:[%s1 + $0x180] sm:$0xf]
    %v137 = vld [vmem:[%s1 + $0x184] sm:$0xf]
    %v138 = vld [vmem:[%s1 + $0x188] sm:$0xf]
    %v139 = vld [vmem:[%s1 + $0x18c] sm:$0xf]
    %v140 = vld [vmem:[%s1 + $0x190] sm:$0xf]
    %v141 = vld [vmem:[%s1 + $0x194] sm:$0xf]
    %v142 = vld [vmem:[%s1 + $0x198] sm:$0xf]
    %v143 = vld [vmem:[%s1 + $0x19c] sm:$0xf]
    %v144 = vld [vmem:[%s1 + $0x1a0] sm:$0xf]
    %v145 = vld [vmem:[%s1 + $0x1a4] sm:$0xf]
    %v146 = vld [vmem:[%s1 + $0x1a8] sm:$0xf]
    %v147 = vld [vmem:[%s1 + $0x1ac] sm:$0xf]
    %v148 = vld [vmem:[%s1 + $0x1b0] sm:$0xf]
    %v149 = vld [vmem:[%s1 + $0x1b4] sm:$0xf]
    %v150 = vld [vmem:[%s1 + $0x1b8] sm:$0xf]
    %v151 = vld [vmem:[%s1 + $0x1bc] sm:$0xf]
    %v152 = vld [vmem:[%s1 + $0x1c0] sm:$0xf]
    %v153 = vld [vmem:[%s1 + $0x1c4] sm:$0xf]
    %v154 = vld [vmem:[%s1 + $0x1c8] sm:$0xf]
    %v155 = vld [vmem:[%s1 + $0x1cc] sm:$0xf]
    %v156 = vld [vmem:[%s1 + $0x1d0] sm:$0xf]
    %v157 = vld [vmem:[%s1 + $0x1d4] sm:$0xf]
    %v158 = vld [vmem:[%s1 + $0x1d8] sm:$0xf]
    %v159 = vld [vmem:[%s1 + $0x1dc] sm:$0xf]
    %v160 = vld [vmem:[%s1 + $0x1e0] sm:$0xf]
    %v161 = vld [vmem:[%s1 + $0x1e4] sm:$0xf]
    %v162 = vld [vmem:[%s1 + $0x1e8] sm:$0xf]
    %v163 = vld [vmem:[%s1 + $0x1ec] sm:$0xf]
    %v164 = vld [vmem:[%s1 + $0x1f0] sm:$0xf]
    %v165 = vld [vmem:[%s1 + $0x1f4] sm:$0xf]
    %v166 = vld [vmem:[%s1 + $0x1f8] sm:$0xf]
    %v167 = vld [vmem:[%s1 + $0x1fc] sm:$0xf]
    %v168 = vld [vmem:[%s2] sm:$0x1]
    %v170 = vperm.slane %v168, 0
    %173 = vst [vmem:[#allocation1] ss:$9 sm:$0xff] %v39
    %v174 = vld [vmem:[#allocation1] sm:$0xff]
    %v175 = vld [vmem:[#allocation1 + $0x9] sm:$0xff]
    %v176 = vld [vmem:[#allocation1 + $0x12] sm:$0xff]
    %v177 = vld [vmem:[#allocation1 + $0x1b] sm:$0xff]
    %v178 = vld [vmem:[#allocation1 + $0x24] sm:$0xff]
    %v179 = vld [vmem:[#allocation1 + $0x2d] sm:$0xff]
    %v180 = vld [vmem:[#allocation1 + $0x36] sm:$0xff]
    %v181 = vld [vmem:[#allocation1 + $0x3f] sm:$0xff]
    %v318 = vunpack.c.l.b16 %v40
    %v319 = vunpack.c.l.b16 %v41
    %v320 = vunpack.c.l.b16 %v42
    %v321 = vunpack.c.l.b16 %v43
    %v322 = vunpack.c.l.b16 %v44
    %v323 = vunpack.c.l.b16 %v45
    %v324 = vunpack.c.l.b16 %v46
    %v325 = vunpack.c.l.b16 %v47
    %v326 = vunpack.c.l.b16 %v48
    %v327 = vunpack.c.l.b16 %v49
    %v328 = vunpack.c.l.b16 %v50
    %v329 = vunpack.c.l.b16 %v51
    %v330 = vunpack.c.l.b16 %v52
    %v331 = vunpack.c.l.b16 %v53
    %v332 = vunpack.c.l.b16 %v54
    %v333 = vunpack.c.l.b16 %v55
    %v334 = vunpack.c.l.b16 %v56
    %v335 = vunpack.c.l.b16 %v57
    %v336 = vunpack.c.l.b16 %v58
    %v337 = vunpack.c.l.b16 %v59
    %v338 = vunpack.c.l.b16 %v60
    %v339 = vunpack.c.l.b16 %v61
    %v340 = vunpack.c.l.b16 %v62
    %v341 = vunpack.c.l.b16 %v63
    %v342 = vunpack.c.l.b16 %v64
    %v343 = vunpack.c.l.b16 %v65
    %v344 = vunpack.c.l.b16 %v66
    %v345 = vunpack.c.l.b16 %v67
    %v346 = vunpack.c.l.b16 %v68
    %v347 = vunpack.c.l.b16 %v69
    %v348 = vunpack.c.l.b16 %v70
    %v349 = vunpack.c.l.b16 %v71
    %v350 = vunpack.c.l.b16 %v72
    %v351 = vunpack.c.l.b16 %v73
    %v352 = vunpack.c.l.b16 %v74
    %v353 = vunpack.c.l.b16 %v75
    %v354 = vunpack.c.l.b16 %v76
    %v355 = vunpack.c.l.b16 %v77
    %v356 = vunpack.c.l.b16 %v78
    %v357 = vunpack.c.l.b16 %v79
    %v358 = vunpack.c.l.b16 %v80
    %v359 = vunpack.c.l.b16 %v81
    %v360 = vunpack.c.l.b16 %v82
    %v361 = vunpack.c.l.b16 %v83
    %v362 = vunpack.c.l.b16 %v84
    %v363 = vunpack.c.l.b16 %v85
    %v364 = vunpack.c.l.b16 %v86
    %v365 = vunpack.c.l.b16 %v87
    %v366 = vunpack.c.l.b16 %v88
    %v367 = vunpack.c.l.b16 %v89
    %v368 = vunpack.c.l.b16 %v90
    %v369 = vunpack.c.l.b16 %v91
    %v370 = vunpack.c.l.b16 %v92
    %v371 = vunpack.c.l.b16 %v93
    %v372 = vunpack.c.l.b16 %v94
    %v373 = vunpack.c.l.b16 %v95
    %v374 = vunpack.c.l.b16 %v96
    %v375 = vunpack.c.l.b16 %v97
    %v376 = vunpack.c.l.b16 %v98
    %v377 = vunpack.c.l.b16 %v99
    %v378 = vunpack.c.l.b16 %v100
    %v379 = vunpack.c.l.b16 %v101
    %v380 = vunpack.c.l.b16 %v102
    %v381 = vunpack.c.l.b16 %v103
    %v382 = vunpack.c.l.b16 %v104
    %v383 = vunpack.c.l.b16 %v105
    %v384 = vunpack.c.l.b16 %v106
    %v385 = vunpack.c.l.b16 %v107
    %v386 = vunpack.c.l.b16 %v108
    %v387 = vunpack.c.l.b16 %v109
    %v388 = vunpack.c.l.b16 %v110
    %v389 = vunpack.c.l.b16 %v111
    %v390 = vunpack.c.l.b16 %v112
    %v391 = vunpack.c.l.b16 %v113
    %v392 = vunpack.c.l.b16 %v114
    %v393 = vunpack.c.l.b16 %v115
    %v394 = vunpack.c.l.b16 %v116
    %v395 = vunpack.c.l.b16 %v117
    %v396 = vunpack.c.l.b16 %v118
    %v397 = vunpack.c.l.b16 %v119
    %v398 = vunpack.c.l.b16 %v120
    %v399 = vunpack.c.l.b16 %v121
    %v400 = vunpack.c.l.b16 %v122
    %v401 = vunpack.c.l.b16 %v123
    %v402 = vunpack.c.l.b16 %v124
    %v403 = vunpack.c.l.b16 %v125
    %v404 = vunpack.c.l.b16 %v126
    %v405 = vunpack.c.l.b16 %v127
    %v406 = vunpack.c.l.b16 %v128
    %v407 = vunpack.c.l.b16 %v129
    %v408 = vunpack.c.l.b16 %v130
    %v409 = vunpack.c.l.b16 %v131
    %v410 = vunpack.c.l.b16 %v132
    %v411 = vunpack.c.l.b16 %v133
    %v412 = vunpack.c.l.b16 %v134
    %v413 = vunpack.c.l.b16 %v135
    %v414 = vunpack.c.l.b16 %v136
    %v415 = vunpack.c.l.b16 %v137
    %v416 = vunpack.c.l.b16 %v138
    %v417 = vunpack.c.l.b16 %v139
    %v418 = vunpack.c.l.b16 %v140
    %v419 = vunpack.c.l.b16 %v141
    %v420 = vunpack.c.l.b16 %v142
    %v421 = vunpack.c.l.b16 %v143
    %v422 = vunpack.c.l.b16 %v144
    %v423 = vunpack.c.l.b16 %v145
    %v424 = vunpack.c.l.b16 %v146
    %v425 = vunpack.c.l.b16 %v147
    %v426 = vunpack.c.l.b16 %v148
    %v427 = vunpack.c.l.b16 %v149
    %v428 = vunpack.c.l.b16 %v150
    %v429 = vunpack.c.l.b16 %v151
    %v430 = vunpack.c.l.b16 %v152
    %v431 = vunpack.c.l.b16 %v153
    %v432 = vunpack.c.l.b16 %v154
    %v433 = vunpack.c.l.b16 %v155
    %v434 = vunpack.c.l.b16 %v156
    %v435 = vunpack.c.l.b16 %v157
    %v436 = vunpack.c.l.b16 %v158
    %v437 = vunpack.c.l.b16 %v159
    %v438 = vunpack.c.l.b16 %v160
    %v439 = vunpack.c.l.b16 %v161
    %v440 = vunpack.c.l.b16 %v162
    %v441 = vunpack.c.l.b16 %v163
    %v442 = vunpack.c.l.b16 %v164
    %v443 = vunpack.c.l.b16 %v165
    %v444 = vunpack.c.l.b16 %v166
    %v445 = vunpack.c.l.b16 %v167
    %v446 = vpack.c.b16 %v319, %v318
    %v447 = vpack.c.b16 %v321, %v320
    %v448 = vpack.c.b16 %v323, %v322
    %v449 = vpack.c.b16 %v325, %v324
    %v450 = vpack.c.b16 %v327, %v326
    %v451 = vpack.c.b16 %v329, %v328
    %v452 = vpack.c.b16 %v331, %v330
    %v453 = vpack.c.b16 %v333, %v332
    %v454 = vpack.c.b16 %v335, %v334
    %v455 = vpack.c.b16 %v337, %v336
    %v456 = vpack.c.b16 %v339, %v338
    %v457 = vpack.c.b16 %v341, %v340
    %v458 = vpack.c.b16 %v343, %v342
    %v459 = vpack.c.b16 %v345, %v344
    %v460 = vpack.c.b16 %v347, %v346
    %v461 = vpack.c.b16 %v349, %v348
    %v462 = vpack.c.b16 %v351, %v350
    %v463 = vpack.c.b16 %v353, %v352
    %v464 = vpack.c.b16 %v355, %v354
    %v465 = vpack.c.b16 %v357, %v356
    %v466 = vpack.c.b16 %v359, %v358
    %v467 = vpack.c.b16 %v361, %v360
    %v468 = vpack.c.b16 %v363, %v362
    %v469 = vpack.c.b16 %v365, %v364
    %v470 = vpack.c.b16 %v367, %v366
    %v471 = vpack.c.b16 %v369, %v368
    %v472 = vpack.c.b16 %v371, %v370
    %v473 = vpack.c.b16 %v373, %v372
    %v474 = vpack.c.b16 %v375, %v374
    %v475 = vpack.c.b16 %v377, %v376
    %v476 = vpack.c.b16 %v379, %v378
    %v477 = vpack.c.b16 %v381, %v380
    %v478 = vpack.c.b16 %v383, %v382
    %v479 = vpack.c.b16 %v385, %v384
    %v480 = vpack.c.b16 %v387, %v386
    %v481 = vpack.c.b16 %v389, %v388
    %v482 = vpack.c.b16 %v391, %v390
    %v483 = vpack.c.b16 %v393, %v392
    %v484 = vpack.c.b16 %v395, %v394
    %v485 = vpack.c.b16 %v397, %v396
    %v486 = vpack.c.b16 %v399, %v398
    %v487 = vpack.c.b16 %v401, %v400
    %v488 = vpack.c.b16 %v403, %v402
    %v489 = vpack.c.b16 %v405, %v404
    %v490 = vpack.c.b16 %v407, %v406
    %v491 = vpack.c.b16 %v409, %v408
    %v492 = vpack.c.b16 %v411, %v410
    %v493 = vpack.c.b16 %v413, %v412
    %v494 = vpack.c.b16 %v415, %v414
    %v495 = vpack.c.b16 %v417, %v416
    %v496 = vpack.c.b16 %v419, %v418
    %v497 = vpack.c.b16 %v421, %v420
    %v498 = vpack.c.b16 %v423, %v422
    %v499 = vpack.c.b16 %v425, %v424
    %v500 = vpack.c.b16 %v427, %v426
    %v501 = vpack.c.b16 %v429, %v428
    %v502 = vpack.c.b16 %v431, %v430
    %v503 = vpack.c.b16 %v433, %v432
    %v504 = vpack.c.b16 %v435, %v434
    %v505 = vpack.c.b16 %v437, %v436
    %v506 = vpack.c.b16 %v439, %v438
    %v507 = vpack.c.b16 %v441, %v440
    %v508 = vpack.c.b16 %v443, %v442
    %v509 = vpack.c.b16 %v445, %v444
    %574 = vmatpush.bf16.msra.mxu0 %v453
    %575 = vmatpush.bf16.msra.mxu0 %v452
    %576 = vmatpush.bf16.msra.mxu0 %v451
    %577 = vmatpush.bf16.msra.mxu0 %v450
    %578 = vmatpush.bf16.msra.mxu0 %v449
    %579 = vmatpush.bf16.msra.mxu0 %v448
    %580 = vmatpush.bf16.msra.mxu0 %v447
    %581 = vmatpush.bf16.msra.mxu0 %v446
    %582 = vmatmul.bf16.gmra.mxu0 %v174
    %v583 = vpop.f32.mrf.mxu0
    %v584 = vadd.f32 %v170, %v583
    %v585 = vpop.f32.mrf.mxu0
    %586 = vdwg.mxu0
    %587 = vmatpush.bf16.msra.mxu0 %v461
    %588 = vmatpush.bf16.msra.mxu0 %v460
    %589 = vmatpush.bf16.msra.mxu0 %v459
    %590 = vmatpush.bf16.msra.mxu0 %v458
    %591 = vmatpush.bf16.msra.mxu0 %v457
    %592 = vmatpush.bf16.msra.mxu0 %v456
    %593 = vmatpush.bf16.msra.mxu0 %v455
    %594 = vmatpush.bf16.msra.mxu0 %v454
    %595 = vmatmul.bf16.gmra.mxu0 %v175
    %v596 = vpop.f32.mrf.mxu0
    %v597 = vadd.f32 %v584, %v596
    %v598 = vpop.f32.mrf.mxu0
    %599 = vdwg.mxu0
    %600 = vmatpush.bf16.msra.mxu0 %v469
    %601 = vmatpush.bf16.msra.mxu0 %v468
    %602 = vmatpush.bf16.msra.mxu0 %v467
    %603 = vmatpush.bf16.msra.mxu0 %v466
    %604 = vmatpush.bf16.msra.mxu0 %v465
    %605 = vmatpush.bf16.msra.mxu0 %v464
    %606 = vmatpush.bf16.msra.mxu0 %v463
    %607 = vmatpush.bf16.msra.mxu0 %v462
    %608 = vmatmul.bf16.gmra.mxu0 %v176
    %v609 = vpop.f32.mrf.mxu0
    %v610 = vadd.f32 %v597, %v609
    %v611 = vpop.f32.mrf.mxu0
    %612 = vdwg.mxu0
    %613 = vmatpush.bf16.msra.mxu0 %v477
    %614 = vmatpush.bf16.msra.mxu0 %v476
    %615 = vmatpush.bf16.msra.mxu0 %v475
    %616 = vmatpush.bf16.msra.mxu0 %v474
    %617 = vmatpush.bf16.msra.mxu0 %v473
    %618 = vmatpush.bf16.msra.mxu0 %v472
    %619 = vmatpush.bf16.msra.mxu0 %v471
    %620 = vmatpush.bf16.msra.mxu0 %v470
    %621 = vmatmul.bf16.gmra.mxu0 %v177
    %v622 = vpop.f32.mrf.mxu0
    %v623 = vadd.f32 %v610, %v622
    %v624 = vpop.f32.mrf.mxu0
    %625 = vdwg.mxu0
    %626 = vmatpush.bf16.msra.mxu0 %v485
    %627 = vmatpush.bf16.msra.mxu0 %v484
    %628 = vmatpush.bf16.msra.mxu0 %v483
    %629 = vmatpush.bf16.msra.mxu0 %v482
    %630 = vmatpush.bf16.msra.mxu0 %v481
    %631 = vmatpush.bf16.msra.mxu0 %v480
    %632 = vmatpush.bf16.msra.mxu0 %v479
    %633 = vmatpush.bf16.msra.mxu0 %v478
    %634 = vmatmul.bf16.gmra.mxu0 %v178
    %v635 = vpop.f32.mrf.mxu0
    %v636 = vadd.f32 %v623, %v635
    %v637 = vpop.f32.mrf.mxu0
    %638 = vdwg.mxu0
    %639 = vmatpush.bf16.msra.mxu0 %v493
    %640 = vmatpush.bf16.msra.mxu0 %v492
    %641 = vmatpush.bf16.msra.mxu0 %v491
    %642 = vmatpush.bf16.msra.mxu0 %v490
    %643 = vmatpush.bf16.msra.mxu0 %v489
    %644 = vmatpush.bf16.msra.mxu0 %v488
    %645 = vmatpush.bf16.msra.mxu0 %v487
    %646 = vmatpush.bf16.msra.mxu0 %v486
    %647 = vmatmul.bf16.gmra.mxu0 %v179
    %v648 = vpop.f32.mrf.mxu0
    %v649 = vadd.f32 %v636, %v648
    %v650 = vpop.f32.mrf.mxu0
    %651 = vdwg.mxu0
    %652 = vmatpush.bf16.msra.mxu0 %v501
    %653 = vmatpush.bf16.msra.mxu0 %v500
    %654 = vmatpush.bf16.msra.mxu0 %v499
    %655 = vmatpush.bf16.msra.mxu0 %v498
    %656 = vmatpush.bf16.msra.mxu0 %v497
    %657 = vmatpush.bf16.msra.mxu0 %v496
    %658 = vmatpush.bf16.msra.mxu0 %v495
    %659 = vmatpush.bf16.msra.mxu0 %v494
    %660 = vmatmul.bf16.gmra.mxu0 %v180
    %v661 = vpop.f32.mrf.mxu0
    %v662 = vadd.f32 %v649, %v661
    %v663 = vpop.f32.mrf.mxu0
    %664 = vdwg.mxu0
    %665 = vmatpush.bf16.msra.mxu0 %v509
    %666 = vmatpush.bf16.msra.mxu0 %v508
    %667 = vmatpush.bf16.msra.mxu0 %v507
    %668 = vmatpush.bf16.msra.mxu0 %v506
    %669 = vmatpush.bf16.msra.mxu0 %v505
    %670 = vmatpush.bf16.msra.mxu0 %v504
    %671 = vmatpush.bf16.msra.mxu0 %v503
    %672 = vmatpush.bf16.msra.mxu0 %v502
    %673 = vmatmul.bf16.gmra.mxu0 %v181
    %v674 = vpop.f32.mrf.mxu0
    %v675 = vadd.f32 %v662, %v674
    %v676 = vpop.f32.mrf.mxu0
    %677 = vdwg.mxu0
    %v678 = vmax.f32 %v675, 0.0
    %v679 = vld [vmem:[%s3] sm:$0xff]
    %v680 = vld [vmem:[%s3 + $0x8] sm:$0xff]
    %v681 = vld [vmem:[%s3 + $0x10] sm:$0xff]
    %v682 = vld [vmem:[%s3 + $0x18] sm:$0xff]
    %v683 = vld [vmem:[%s3 + $0x20] sm:$0xff]
    %v684 = vld [vmem:[%s3 + $0x28] sm:$0xff]
    %v685 = vld [vmem:[%s3 + $0x30] sm:$0xff]
    %v686 = vld [vmem:[%s3 + $0x38] sm:$0xff]
    %v687 = vld [vmem:[%s3 + $0x40] sm:$0xff]
    %v688 = vld [vmem:[%s3 + $0x48] sm:$0xff]
    %v689 = vld [vmem:[%s3 + $0x50] sm:$0xff]
    %v690 = vld [vmem:[%s3 + $0x58] sm:$0xff]
    %v691 = vld [vmem:[%s3 + $0x60] sm:$0xff]
    %v692 = vld [vmem:[%s3 + $0x68] sm:$0xff]
    %v693 = vld [vmem:[%s3 + $0x70] sm:$0xff]
    %v694 = vld [vmem:[%s3 + $0x78] sm:$0xff]
    %v695 = vld [vmem:[%s3 + $0x80] sm:$0xff]
    %v696 = vld [vmem:[%s3 + $0x88] sm:$0xff]
    %v697 = vld [vmem:[%s3 + $0x90] sm:$0xff]
    %v698 = vld [vmem:[%s3 + $0x98] sm:$0xff]
    %v699 = vld [vmem:[%s3 + $0xa0] sm:$0xff]
    %v700 = vld [vmem:[%s3 + $0xa8] sm:$0xff]
    %v701 = vld [vmem:[%s3 + $0xb0] sm:$0xff]
    %v702 = vld [vmem:[%s3 + $0xb8] sm:$0xff]
    %vm703 = vcmask 261120
    %v705 = vsel %vm703, %v678, 0
    %707 = vmatpush.msra.mxu0 0.0
    %708 = vmatpush.msra.mxu0 0.0
    %709 = vmatpush.msra.mxu0 0.0
    %710 = vmatpush.msra.mxu0 0.0
    %711 = vmatpush.msra.mxu0 0.0
    %712 = vmatpush.msra.mxu0 0.0
    %713 = vmatpush.msra.mxu0 0.0
    %714 = vmatpush.msra.mxu0 0.0
    %715 = vmatpush.msra.mxu0 0.0
    %716 = vmatpush.msra.mxu0 0.0
    %717 = vmatpush.msra.mxu0 0.0
    %718 = vmatpush.msra.mxu0 0.0
    %719 = vmatpush.msra.mxu0 %v697
    %720 = vmatpush.msra.mxu0 %v691
    %721 = vmatpush.msra.mxu0 %v685
    %722 = vmatpush.msra.mxu0 %v679
    %723 = vmatmul.f32.gmra.mxu0 %v705
    %v724 = vpop.f32.mrf.mxu0
    %v725 = vadd.f32 0.0, %v724
    %726 = vdwg.mxu0
    %727 = vmatpush.msra.mxu0 0.0
    %728 = vmatpush.msra.mxu0 0.0
    %729 = vmatpush.msra.mxu0 0.0
    %730 = vmatpush.msra.mxu0 0.0
    %731 = vmatpush.msra.mxu0 0.0
    %732 = vmatpush.msra.mxu0 0.0
    %733 = vmatpush.msra.mxu0 0.0
    %734 = vmatpush.msra.mxu0 0.0
    %735 = vmatpush.msra.mxu0 0.0
    %736 = vmatpush.msra.mxu0 0.0
    %737 = vmatpush.msra.mxu0 0.0
    %738 = vmatpush.msra.mxu0 0.0
    %739 = vmatpush.msra.mxu0 %v698
    %740 = vmatpush.msra.mxu0 %v692
    %741 = vmatpush.msra.mxu0 %v686
    %742 = vmatpush.msra.mxu0 %v680
    %743 = vmatmul.f32.gmra.mxu0 %v705
    %v744 = vpop.f32.mrf.mxu0
    %v745 = vadd.f32 0.0, %v744
    %746 = vdwg.mxu0
    %747 = vmatpush.msra.mxu0 0.0
    %748 = vmatpush.msra.mxu0 0.0
    %749 = vmatpush.msra.mxu0 0.0
    %750 = vmatpush.msra.mxu0 0.0
    %751 = vmatpush.msra.mxu0 0.0
    %752 = vmatpush.msra.mxu0 0.0
    %753 = vmatpush.msra.mxu0 0.0
    %754 = vmatpush.msra.mxu0 0.0
    %755 = vmatpush.msra.mxu0 0.0
    %756 = vmatpush.msra.mxu0 0.0
    %757 = vmatpush.msra.mxu0 0.0
    %758 = vmatpush.msra.mxu0 0.0
    %759 = vmatpush.msra.mxu0 %v699
    %760 = vmatpush.msra.mxu0 %v693
    %761 = vmatpush.msra.mxu0 %v687
    %762 = vmatpush.msra.mxu0 %v681
    %763 = vmatmul.f32.gmra.mxu0 %v705
    %v764 = vpop.f32.mrf.mxu0
    %v765 = vadd.f32 0.0, %v764
    %766 = vdwg.mxu0
    %767 = vmatpush.msra.mxu0 0.0
    %768 = vmatpush.msra.mxu0 0.0
    %769 = vmatpush.msra.mxu0 0.0
    %770 = vmatpush.msra.mxu0 0.0
    %771 = vmatpush.msra.mxu0 0.0
    %772 = vmatpush.msra.mxu0 0.0
    %773 = vmatpush.msra.mxu0 0.0
    %774 = vmatpush.msra.mxu0 0.0
    %775 = vmatpush.msra.mxu0 0.0
    %776 = vmatpush.msra.mxu0 0.0
    %777 = vmatpush.msra.mxu0 0.0
    %778 = vmatpush.msra.mxu0 0.0
    %779 = vmatpush.msra.mxu0 %v700
    %780 = vmatpush.msra.mxu0 %v694
    %781 = vmatpush.msra.mxu0 %v688
    %782 = vmatpush.msra.mxu0 %v682
    %783 = vmatmul.f32.gmra.mxu0 %v705
    %v784 = vpop.f32.mrf.mxu0
    %v785 = vadd.f32 0.0, %v784
    %786 = vdwg.mxu0
    %787 = vmatpush.msra.mxu0 0.0
    %788 = vmatpush.msra.mxu0 0.0
    %789 = vmatpush.msra.mxu0 0.0
    %790 = vmatpush.msra.mxu0 0.0
    %791 = vmatpush.msra.mxu0 0.0
    %792 = vmatpush.msra.mxu0 0.0
    %793 = vmatpush.msra.mxu0 0.0
    %794 = vmatpush.msra.mxu0 0.0
    %795 = vmatpush.msra.mxu0 0.0
    %796 = vmatpush.msra.mxu0 0.0
    %797 = vmatpush.msra.mxu0 0.0
    %798 = vmatpush.msra.mxu0 0.0
    %799 = vmatpush.msra.mxu0 %v701
    %800 = vmatpush.msra.mxu0 %v695
    %801 = vmatpush.msra.mxu0 %v689
    %802 = vmatpush.msra.mxu0 %v683
    %803 = vmatmul.f32.gmra.mxu0 %v705
    %v804 = vpop.f32.mrf.mxu0
    %v805 = vadd.f32 0.0, %v804
    %806 = vdwg.mxu0
    %807 = vmatpush.msra.mxu0 0.0
    %808 = vmatpush.msra.mxu0 0.0
    %809 = vmatpush.msra.mxu0 0.0
    %810 = vmatpush.msra.mxu0 0.0
    %811 = vmatpush.msra.mxu0 0.0
    %812 = vmatpush.msra.mxu0 0.0
    %813 = vmatpush.msra.mxu0 0.0
    %814 = vmatpush.msra.mxu0 0.0
    %815 = vmatpush.msra.mxu0 0.0
    %816 = vmatpush.msra.mxu0 0.0
    %817 = vmatpush.msra.mxu0 0.0
    %818 = vmatpush.msra.mxu0 0.0
    %819 = vmatpush.msra.mxu0 %v702
    %820 = vmatpush.msra.mxu0 %v696
    %821 = vmatpush.msra.mxu0 %v690
    %822 = vmatpush.msra.mxu0 %v684
    %823 = vmatmul.f32.gmra.mxu0 %v705
    %v824 = vpop.f32.mrf.mxu0
    %v825 = vadd.f32 0.0, %v824
    %826 = vdwg.mxu0
    %v827 = vld [vmem:[%s4] sm:$0x77]
    %v828 = vld [vmem:[%s4 + $0x8] sm:$0x7]
    %v829 = vld [vmem:[%s5] sm:$0x77]
    %v830 = vld [vmem:[%s5 + $0x8] sm:$0x7]
    %v831 = vld [vmem:[%s6] sm:$0x77]
    %v832 = vld [vmem:[%s6 + $0x8] sm:$0x7]
    %v833 = vld [vmem:[%s7] sm:$0x77]
    %v834 = vld [vmem:[%s7 + $0x8] sm:$0x7]
    %v835 = vld [vmem:[%s8] sm:$0x77]
    %v836 = vld [vmem:[%s8 + $0x8] sm:$0x7]
    %v839 = vperm.slane %v827, 0
    %v840 = vperm.slane %v827, 4
    %v841 = vperm.slane %v828, 0
    %v845 = vperm.slane %v839, 0
    %v846 = vperm.slane %v840, 0
    %v847 = vperm.slane %v841, 0
    %v848 = vsub.f32 %v725, %v845
    %v849 = vsub.f32 %v745, %v846
    %v850 = vsub.f32 %v765, %v847
    %v853 = vperm.slane %v831, 0
    %v854 = vperm.slane %v831, 4
    %v855 = vperm.slane %v832, 0
    %v859 = vperm.slane %v853, 0
    %v860 = vperm.slane %v854, 0
    %v861 = vperm.slane %v855, 0
    %v862 = vmul.f32 %v848, %v859
    %v863 = vmul.f32 %v849, %v860
    %v864 = vmul.f32 %v850, %v861
    %v867 = vperm.slane %v829, 0
    %v868 = vperm.slane %v829, 4
    %v869 = vperm.slane %v830, 0
    %v873 = vperm.slane %v867, 0
    %v874 = vperm.slane %v868, 0
    %v875 = vperm.slane %v869, 0
    %v876 = vsub.f32 %v785, %v873
    %v877 = vsub.f32 %v805, %v874
    %v878 = vsub.f32 %v825, %v875
    %v881 = vperm.slane %v833, 0
    %v882 = vperm.slane %v833, 4
    %v883 = vperm.slane %v834, 0
    %v887 = vperm.slane %v881, 0
    %v888 = vperm.slane %v882, 0
    %v889 = vperm.slane %v883, 0
    %v890 = vmul.f32 %v876, %v887
    %v891 = vmul.f32 %v877, %v888
    %v892 = vmul.f32 %v878, %v889
    %v893 = vmul.f32 %v862, %v862
    %v894 = vmul.f32 %v863, %v863
    %v895 = vmul.f32 %v864, %v864
    %v896 = vmul.f32 %v890, %v890
    %v897 = vmul.f32 %v891, %v891
    %v898 = vmul.f32 %v892, %v892
    %v899 = vadd.f32 %v893, %v896
    %v900 = vadd.f32 %v894, %v897
    %v901 = vadd.f32 %v895, %v898
    %v902 = vmul.f32 %v899, -0.5
    %v903 = vmul.f32 %v900, -0.5
    %v904 = vmul.f32 %v901, -0.5
    %v907 = vperm.slane %v835, 0
    %v908 = vperm.slane %v835, 4
    %v909 = vperm.slane %v836, 0
    %v913 = vperm.slane %v907, 0
    %v914 = vperm.slane %v908, 0
    %v915 = vperm.slane %v909, 0
    %v916 = vadd.f32 %v902, %v913
    %v917 = vadd.f32 %v903, %v914
    %v918 = vadd.f32 %v904, %v915
    %v919 = vperm.slane %v827, 1
    %v920 = vperm.slane %v827, 5
    %v921 = vperm.slane %v828, 1
    %v925 = vperm.slane %v919, 1
    %v926 = vperm.slane %v920, 1
    %v927 = vperm.slane %v921, 1
    %v928 = vsub.f32 %v725, %v925
    %v929 = vsub.f32 %v745, %v926
    %v930 = vsub.f32 %v765, %v927
    %v931 = vperm.slane %v831, 1
    %v932 = vperm.slane %v831, 5
    %v933 = vperm.slane %v832, 1
    %v937 = vperm.slane %v931, 1
    %v938 = vperm.slane %v932, 1
    %v939 = vperm.slane %v933, 1
    %v940 = vmul.f32 %v928, %v937
    %v941 = vmul.f32 %v929, %v938
    %v942 = vmul.f32 %v930, %v939
    %v943 = vperm.slane %v829, 1
    %v944 = vperm.slane %v829, 5
    %v945 = vperm.slane %v830, 1
    %v949 = vperm.slane %v943, 1
    %v950 = vperm.slane %v944, 1
    %v951 = vperm.slane %v945, 1
    %v952 = vsub.f32 %v785, %v949
    %v953 = vsub.f32 %v805, %v950
    %v954 = vsub.f32 %v825, %v951
    %v955 = vperm.slane %v833, 1
    %v956 = vperm.slane %v833, 5
    %v957 = vperm.slane %v834, 1
    %v961 = vperm.slane %v955, 1
    %v962 = vperm.slane %v956, 1
    %v963 = vperm.slane %v957, 1
    %v964 = vmul.f32 %v952, %v961
    %v965 = vmul.f32 %v953, %v962
    %v966 = vmul.f32 %v954, %v963
    %v967 = vmul.f32 %v940, %v940
    %v968 = vmul.f32 %v941, %v941
    %v969 = vmul.f32 %v942, %v942
    %v970 = vmul.f32 %v964, %v964
    %v971 = vmul.f32 %v965, %v965
    %v972 = vmul.f32 %v966, %v966
    %v973 = vadd.f32 %v967, %v970
    %v974 = vadd.f32 %v968, %v971
    %v975 = vadd.f32 %v969, %v972
    %v976 = vmul.f32 %v973, -0.5
    %v977 = vmul.f32 %v974, -0.5
    %v978 = vmul.f32 %v975, -0.5
    %v979 = vperm.slane %v835, 1
    %v980 = vperm.slane %v835, 5
    %v981 = vperm.slane %v836, 1
    %v985 = vperm.slane %v979, 1
    %v986 = vperm.slane %v980, 1
    %v987 = vperm.slane %v981, 1
    %v988 = vadd.f32 %v976, %v985
    %v989 = vadd.f32 %v977, %v986
    %v990 = vadd.f32 %v978, %v987
    %v991 = vperm.slane %v827, 2
    %v992 = vperm.slane %v827, 6
    %v993 = vperm.slane %v828, 2
    %v997 = vperm.slane %v991, 2
    %v998 = vperm.slane %v992, 2
    %v999 = vperm.slane %v993, 2
    %v1000 = vsub.f32 %v725, %v997
    %v1001 = vsub.f32 %v745, %v998
    %v1002 = vsub.f32 %v765, %v999
    %v1003 = vperm.slane %v831, 2
    %v1004 = vperm.slane %v831, 6
    %v1005 = vperm.slane %v832, 2
    %v1009 = vperm.slane %v1003, 2
    %v1010 = vperm.slane %v1004, 2
    %v1011 = vperm.slane %v1005, 2
    %v1012 = vmul.f32 %v1000, %v1009
    %v1013 = vmul.f32 %v1001, %v1010
    %v1014 = vmul.f32 %v1002, %v1011
    %v1015 = vperm.slane %v829, 2
    %v1016 = vperm.slane %v829, 6
    %v1017 = vperm.slane %v830, 2
    %v1021 = vperm.slane %v1015, 2
    %v1022 = vperm.slane %v1016, 2
    %v1023 = vperm.slane %v1017, 2
    %v1024 = vsub.f32 %v785, %v1021
    %v1025 = vsub.f32 %v805, %v1022
    %v1026 = vsub.f32 %v825, %v1023
    %v1027 = vperm.slane %v833, 2
    %v1028 = vperm.slane %v833, 6
    %v1029 = vperm.slane %v834, 2
    %v1033 = vperm.slane %v1027, 2
    %v1034 = vperm.slane %v1028, 2
    %v1035 = vperm.slane %v1029, 2
    %v1036 = vmul.f32 %v1024, %v1033
    %v1037 = vmul.f32 %v1025, %v1034
    %v1038 = vmul.f32 %v1026, %v1035
    %v1039 = vmul.f32 %v1012, %v1012
    %v1040 = vmul.f32 %v1013, %v1013
    %v1041 = vmul.f32 %v1014, %v1014
    %v1042 = vmul.f32 %v1036, %v1036
    %v1043 = vmul.f32 %v1037, %v1037
    %v1044 = vmul.f32 %v1038, %v1038
    %v1045 = vadd.f32 %v1039, %v1042
    %v1046 = vadd.f32 %v1040, %v1043
    %v1047 = vadd.f32 %v1041, %v1044
    %v1048 = vmul.f32 %v1045, -0.5
    %v1049 = vmul.f32 %v1046, -0.5
    %v1050 = vmul.f32 %v1047, -0.5
    %v1051 = vperm.slane %v835, 2
    %v1052 = vperm.slane %v835, 6
    %v1053 = vperm.slane %v836, 2
    %v1057 = vperm.slane %v1051, 2
    %v1058 = vperm.slane %v1052, 2
    %v1059 = vperm.slane %v1053, 2
    %v1060 = vadd.f32 %v1048, %v1057
    %v1061 = vadd.f32 %v1049, %v1058
    %v1062 = vadd.f32 %v1050, %v1059
    %v1063 = vmax.f32 %v916, %v988
    %v1064 = vmax.f32 %v917, %v989
    %v1065 = vmax.f32 %v918, %v990
    %v1066 = vmax.f32 %v1063, %v1060
    %v1067 = vmax.f32 %v1064, %v1061
    %v1068 = vmax.f32 %v1065, %v1062
    %v1069 = vsub.f32 %v916, %v1066
    %v1070 = vsub.f32 %v917, %v1067
    %v1071 = vsub.f32 %v918, %v1068
    %v1072 = vmul.f32 %v1069, 1.442695
    %v1073 = vpow.pop %v1072
    %v1074 = vmul.f32 %v1070, 1.442695
    %v1075 = vpow.pop %v1074
    %v1076 = vmul.f32 %v1071, 1.442695
    %v1077 = vpow.pop %v1076
    %v1078 = vsub.f32 %v988, %v1066
    %v1079 = vsub.f32 %v989, %v1067
    %v1080 = vsub.f32 %v990, %v1068
    %v1081 = vmul.f32 %v1078, 1.442695
    %v1082 = vpow.pop %v1081
    %v1083 = vmul.f32 %v1079, 1.442695
    %v1084 = vpow.pop %v1083
    %v1085 = vmul.f32 %v1080, 1.442695
    %v1086 = vpow.pop %v1085
    %v1087 = vadd.f32 %v1073, %v1082
    %v1088 = vadd.f32 %v1075, %v1084
    %v1089 = vadd.f32 %v1077, %v1086
    %v1090 = vsub.f32 %v1060, %v1066
    %v1091 = vsub.f32 %v1061, %v1067
    %v1092 = vsub.f32 %v1062, %v1068
    %v1093 = vmul.f32 %v1090, 1.442695
    %v1094 = vpow.pop %v1093
    %v1095 = vmul.f32 %v1091, 1.442695
    %v1096 = vpow.pop %v1095
    %v1097 = vmul.f32 %v1092, 1.442695
    %v1098 = vpow.pop %v1097
    %v1099 = vadd.f32 %v1087, %v1094
    %v1100 = vadd.f32 %v1088, %v1096
    %v1101 = vadd.f32 %v1089, %v1098
    %v1102 = vlog2.pop %v1099
    %v1103 = vmul.f32 %v1102, 0.6931472
    %v1104 = vlog2.pop %v1100
    %v1105 = vmul.f32 %v1104, 0.6931472
    %v1106 = vlog2.pop %v1101
    %v1107 = vmul.f32 %v1106, 0.6931472
    %v1108 = vadd.f32 %v1103, %v1066
    %v1109 = vadd.f32 %v1105, %v1067
    %v1110 = vadd.f32 %v1107, %v1068
    %v1111 = vld [vmem:[%s9] sm:$0xff]
    %v1112 = vld [vmem:[%s9 + $0x8] sm:$0xff]
    %v1113 = vld [vmem:[%s9 + $0x10] sm:$0xff]
    %v1114 = vld [vmem:[%s9 + $0x18] sm:$0xff]
    %v1115 = vld [vmem:[%s9 + $0x20] sm:$0xff]
    %v1116 = vld [vmem:[%s9 + $0x28] sm:$0xff]
    %v1117 = vld [vmem:[%s9 + $0x30] sm:$0xff]
    %v1118 = vld [vmem:[%s9 + $0x38] sm:$0xff]
    %v1119 = vld [vmem:[%s9 + $0x40] sm:$0xff]
    %v1120 = vld [vmem:[%s9 + $0x48] sm:$0xff]
    %v1121 = vld [vmem:[%s9 + $0x50] sm:$0xff]
    %v1122 = vld [vmem:[%s9 + $0x58] sm:$0xff]
    %v1123 = vld [vmem:[%s9 + $0x60] sm:$0xff]
    %v1124 = vld [vmem:[%s9 + $0x68] sm:$0xff]
    %v1125 = vld [vmem:[%s9 + $0x70] sm:$0xff]
    %v1126 = vld [vmem:[%s9 + $0x78] sm:$0xff]
    %v1127 = vld [vmem:[%s9 + $0x80] sm:$0xff]
    %v1128 = vld [vmem:[%s9 + $0x88] sm:$0xff]
    %v1129 = vld [vmem:[%s9 + $0x90] sm:$0xff]
    %v1130 = vld [vmem:[%s9 + $0x98] sm:$0xff]
    %v1131 = vld [vmem:[%s9 + $0xa0] sm:$0xff]
    %v1132 = vld [vmem:[%s9 + $0xa8] sm:$0xff]
    %v1133 = vld [vmem:[%s9 + $0xb0] sm:$0xff]
    %v1134 = vld [vmem:[%s9 + $0xb8] sm:$0xff]
    %v1135 = vld [vmem:[%s9 + $0xc0] sm:$0xff]
    %v1136 = vld [vmem:[%s9 + $0xc8] sm:$0xff]
    %v1137 = vld [vmem:[%s9 + $0xd0] sm:$0xff]
    %v1138 = vld [vmem:[%s9 + $0xd8] sm:$0xff]
    %v1139 = vld [vmem:[%s9 + $0xe0] sm:$0xff]
    %v1140 = vld [vmem:[%s9 + $0xe8] sm:$0xff]
    %v1141 = vld [vmem:[%s9 + $0xf0] sm:$0xff]
    %v1142 = vld [vmem:[%s9 + $0xf8] sm:$0xff]
    %v1143 = vld [vmem:[%s9 + $0x100] sm:$0xff]
    %v1144 = vld [vmem:[%s9 + $0x108] sm:$0xff]
    %v1145 = vld [vmem:[%s9 + $0x110] sm:$0xff]
    %v1146 = vld [vmem:[%s9 + $0x118] sm:$0xff]
    %v1147 = vld [vmem:[%s9 + $0x120] sm:$0xff]
    %v1148 = vld [vmem:[%s9 + $0x128] sm:$0xff]
    %v1149 = vld [vmem:[%s9 + $0x130] sm:$0xff]
    %v1150 = vld [vmem:[%s9 + $0x138] sm:$0xff]
    %v1151 = vld [vmem:[%s9 + $0x140] sm:$0xff]
    %v1152 = vld [vmem:[%s9 + $0x148] sm:$0xff]
    %v1153 = vld [vmem:[%s9 + $0x150] sm:$0xff]
    %v1154 = vld [vmem:[%s9 + $0x158] sm:$0xff]
    %v1155 = vld [vmem:[%s9 + $0x160] sm:$0xff]
    %v1156 = vld [vmem:[%s9 + $0x168] sm:$0xff]
    %v1157 = vld [vmem:[%s9 + $0x170] sm:$0xff]
    %v1158 = vld [vmem:[%s9 + $0x178] sm:$0xff]
    %v1159 = vld [vmem:[%s10] sm:$0x1]
    %v1161 = vperm.slane %v1159, 0
    %1163 = vmatpush.msra.mxu0 %v1126
    %1164 = vmatpush.msra.mxu0 %v1125
    %1165 = vmatpush.msra.mxu0 %v1124
    %1166 = vmatpush.msra.mxu0 %v1123
    %1167 = vmatpush.msra.mxu0 %v1122
    %1168 = vmatpush.msra.mxu0 %v1121
    %1169 = vmatpush.msra.mxu0 %v1120
    %1170 = vmatpush.msra.mxu0 %v1119
    %1171 = vmatpush.msra.mxu0 %v1118
    %1172 = vmatpush.msra.mxu0 %v1117
    %1173 = vmatpush.msra.mxu0 %v1116
    %1174 = vmatpush.msra.mxu0 %v1115
    %1175 = vmatpush.msra.mxu0 %v1114
    %1176 = vmatpush.msra.mxu0 %v1113
    %1177 = vmatpush.msra.mxu0 %v1112
    %1178 = vmatpush.msra.mxu0 %v1111
    %1179 = vmatmul.f32.gmra.mxu0 %v1108
    %v1180 = vpop.f32.mrf.mxu0
    %v1181 = vadd.f32 %v1161, %v1180
    %1182 = vdwg.mxu0
    %1183 = vmatpush.msra.mxu0 %v1142
    %1184 = vmatpush.msra.mxu0 %v1141
    %1185 = vmatpush.msra.mxu0 %v1140
    %1186 = vmatpush.msra.mxu0 %v1139
    %1187 = vmatpush.msra.mxu0 %v1138
    %1188 = vmatpush.msra.mxu0 %v1137
    %1189 = vmatpush.msra.mxu0 %v1136
    %1190 = vmatpush.msra.mxu0 %v1135
    %1191 = vmatpush.msra.mxu0 %v1134
    %1192 = vmatpush.msra.mxu0 %v1133
    %1193 = vmatpush.msra.mxu0 %v1132
    %1194 = vmatpush.msra.mxu0 %v1131
    %1195 = vmatpush.msra.mxu0 %v1130
    %1196 = vmatpush.msra.mxu0 %v1129
    %1197 = vmatpush.msra.mxu0 %v1128
    %1198 = vmatpush.msra.mxu0 %v1127
    %1199 = vmatmul.f32.gmra.mxu0 %v1109
    %v1200 = vpop.f32.mrf.mxu0
    %v1201 = vadd.f32 %v1181, %v1200
    %1202 = vdwg.mxu0
    %1203 = vmatpush.msra.mxu0 %v1158
    %1204 = vmatpush.msra.mxu0 %v1157
    %1205 = vmatpush.msra.mxu0 %v1156
    %1206 = vmatpush.msra.mxu0 %v1155
    %1207 = vmatpush.msra.mxu0 %v1154
    %1208 = vmatpush.msra.mxu0 %v1153
    %1209 = vmatpush.msra.mxu0 %v1152
    %1210 = vmatpush.msra.mxu0 %v1151
    %1211 = vmatpush.msra.mxu0 %v1150
    %1212 = vmatpush.msra.mxu0 %v1149
    %1213 = vmatpush.msra.mxu0 %v1148
    %1214 = vmatpush.msra.mxu0 %v1147
    %1215 = vmatpush.msra.mxu0 %v1146
    %1216 = vmatpush.msra.mxu0 %v1145
    %1217 = vmatpush.msra.mxu0 %v1144
    %1218 = vmatpush.msra.mxu0 %v1143
    %1219 = vmatmul.f32.gmra.mxu0 %v1110
    %v1220 = vpop.f32.mrf.mxu0
    %v1221 = vadd.f32 %v1201, %v1220
    %1222 = vdwg.mxu0
    %vm1223 = vcmask 74752
    %v1224 = vsel %vm1223, %v1221, -inf
    %1225 = vmax.xlane.f32.xlu0 %v1224
    %v1226 = vpop.xlane.xlu0 %1225
    %v1227 = vsub.f32 %v1221, %v1226
    %v1228 = vmul.f32 %v1227, 1.442695
    %v1229 = vpow.pop %v1228
    %v1230 = vsel %vm1223, %v1229, 0.0
    %1231 = vadd.xlane.f32.xlu0 %v1230
    %v1232 = vpop.xlane.xlu0 %1231
    %v1233 = vlog2.pop %v1232
    %v1234 = vmul.f32 %v1233, 0.6931472
    %v1235 = vadd.f32 %v1234, %v1226
    %v1236 = vsub.f32 %v1221, %v1235
    %1237 = vst.msk [vmem:[#allocation2] sm:$0x3] %vm1223, %v1236
    // Predicated region
    $region46: #{tpu_custom_call.1} parent=1 // pred_check
      _
    $region47: #{tpu_custom_call.1} parent=1 // pred_check_branch
      %1239 = sbr.rel (0) target = $region49
    $region48: #{tpu_custom_call.1} parent=1 // pred_region
      %1241 = vsyncadd [#allocation3], 0
      %s1243 = sshll.u32 [#allocation2], 4
      %s1244 = int_to_ptr.vmem [resolvable:$true] %s1243
      %s1245 = sshll.u32 %s11, 4
      %s1246 = int_to_ptr.hbm [resolvable:$true] %s1245
      %1248 = dma.vmem_to_hbm [thread:$0]  %s1244, 32, %s1246, [#allocation3]
    $region49: #{tpu_custom_call.1} parent=1 // pred_fallthru
      _
    // Predicated region
    $region50: #{tpu_custom_call.1} parent=1 // pred_check
      _
    $region51: #{tpu_custom_call.1} parent=1 // pred_check_branch
      %1250 = sbr.rel (0) target = $region53
    $region52: #{tpu_custom_call.1} parent=1 // pred_region
      %1252 = dma.done [#allocation3], 32
    $region53: #{tpu_custom_call.1} parent=1 // pred_fallthru
      _
    %1253 = vsyncpa [#allocation3], 1

</llo_original>
